<compile_context>
chip_gen: v7x
topology: tpu7x:2x2x1
jax: 0.10.0
libtpu: 0.0.40
codegen_flags: <defaults>
</compile_context>

<pallas_src>
import functools

import jax
import jax.numpy as jnp
from jax.experimental import pallas as pl
from jax.experimental.pallas import tpu as pltpu

HID1 = 16   # layer-1 width
HID2 = 8    # layer-2 width


def _critic_kernel(x_ref, w1_ref, b1_ref, w2_ref, b2_ref, w3_ref, b3_ref, o_ref):
    x = x_ref[...]                                               # (1, TB) batch on lanes

    # Layer 1 (1 -> 16): rank-1 broadcast FMA on the VPU; hidden dim on sublanes.
    h1 = jnp.maximum(w1_ref[...] * x + b1_ref[...], 0.0)        # (16,1)*(1,TB) -> (16, TB)

    # Layer 2 (16 -> 8): one small MXU dot; output stays lane-dense in batch.
    h2 = jnp.dot(w2_ref[...], h1, preferred_element_type=jnp.float32) + b2_ref[...]
    h2 = jnp.maximum(h2, 0.0)                                    # (8, TB)

    # Layer 3 (8 -> 1): weighted 8-row sublane reduction -> lane-dense row.
    out = jnp.sum(h2 * w3_ref[...], axis=0, keepdims=True) + b3_ref[...]   # (1, TB)
    o_ref[...] = out.astype(o_ref.dtype)


def prepare_params(params):
    """One-time transpose/reshape of the MLP params into the batch-on-lanes
    layout (hoisted out of the per-call path)."""
    (w1, b1), (w2, b2), (w3, b3) = params
    f32 = jnp.float32
    w1c = jnp.asarray(w1, f32).reshape(HID1, 1)     # (16, 1)  (w1 is (1,16))
    b1c = jnp.asarray(b1, f32).reshape(HID1, 1)     # (16, 1)
    w2t = jnp.asarray(w2, f32).T                    # (8, 16)  (w2 is (16,8))
    b2c = jnp.asarray(b2, f32).reshape(HID2, 1)     # (8, 1)
    w3c = jnp.asarray(w3, f32).reshape(HID2, 1)     # (8, 1)   (w3 is (8,1))
    b3c = jnp.asarray(b3, f32).reshape(1, 1)        # (1, 1)
    return (w1c, b1c, w2t, b2c, w3c, b3c)


def _round_up(n, m):
    return ((n + m - 1) // m) * m


@functools.partial(jax.jit, static_argnames=("block_b",))
def critic_forward(h_features, prepared_params, *, block_b=32768):
    """h_features: (B, 1) (or (B,)) float32.  Returns (detached_value, value), each (B,)."""
    w1c, b1c, w2t, b2c, w3c, b3c = prepared_params
    B = h_features.shape[0]
    x = h_features.astype(jnp.float32).reshape(1, B)   # batch on the lane axis

    # Lane-dense batch tiling.  Small batches: one full-extent block (always
    # legal).  Large batches: a multiple-of-128 lane tile, capped so that
    # (a) the grid has >= 2 "parallel" steps (v7x megacore) and
    # (b) per-step VMEM (x/out double buffers + (16,tb)/(8,tb) intermediates)
    #     stays well inside the 32 MiB scoped budget on every generation.
    if B <= 1024:
        tb = B
    else:
        tb = min(block_b, _round_up(pl.cdiv(B, 2), 128))
    grid = (pl.cdiv(B, tb),)

    def resident(shape):
        # Constant block index -> the (tiny) array stays resident in VMEM
        # across all grid steps; no per-step re-DMA.
        return pl.BlockSpec(shape, lambda i: (0, 0))

    out = pl.pallas_call(
        _critic_kernel,
        out_shape=jax.ShapeDtypeStruct((1, B), jnp.float32),
        grid=grid,
        in_specs=[
            pl.BlockSpec((1, tb), lambda i: (0, i)),    # activations, lane-tiled batch
            resident((HID1, 1)), resident((HID1, 1)),   # w1, b1 (columns)
            resident((HID2, HID1)), resident((HID2, 1)),  # w2^T, b2
            resident((HID2, 1)), resident((1, 1)),      # w3 (column), b3
        ],
        out_specs=pl.BlockSpec((1, tb), lambda i: (0, i)),   # lane-dense output row
        compiler_params=pltpu.CompilerParams(
            dimension_semantics=("parallel",),
            vmem_limit_bytes=32 * 1024 * 1024,
        ),
    )(x, w1c, b1c, w2t, b2c, w3c, b3c)

    baseline_value = out[0, :]  # squeeze(): (1, B) -> (B,)
    # .detach() -> stop_gradient
    return jax.lax.stop_gradient(baseline_value), baseline_value


def init_params(key):
    """PyTorch nn.Linear-style deterministic init (uniform +/- 1/sqrt(fan_in))."""
    dims = [(1, 16), (16, 8), (8, 1)]
    params = []
    for (din, dout) in dims:
        key, kw, kb = jax.random.split(key, 3)
        bound = 1.0 / (din ** 0.5)
        w = jax.random.uniform(kw, (din, dout), jnp.float32, -bound, bound)
        b = jax.random.uniform(kb, (dout,), jnp.float32, -bound, bound)
        params.append((w, b))
    return params


def reference_forward(h_features, params):
    x = h_features.reshape(-1, 1)
    (w1, b1), (w2, b2), (w3, b3) = params
    x = jnp.maximum(x @ w1 + b1, 0.0)
    x = jnp.maximum(x @ w2 + b2, 0.0)
    x = x @ w3 + b3
    return x[:, 0]


if __name__ == "__main__":
    key = jax.random.PRNGKey(0)
    kp, kx = jax.random.split(key)
    params = init_params(kp)
    prepped = prepare_params(params)

    # Case 1: small batch -> single full-extent lane block.
    B = 64
    h_features = jax.random.normal(kx, (B, 1), jnp.float32)
    detached, value = critic_forward(h_features, prepped)
    jax.block_until_ready(value)
    ref = reference_forward(h_features, params)
    assert value.shape == (B,)
    assert detached.shape == (B,)
    assert jnp.allclose(value, ref, atol=1e-5, rtol=1e-5)
    assert jnp.allclose(detached, ref, atol=1e-5, rtol=1e-5)

    # Case 2: larger batch, multi-step lane-tiled grid (4 tiles of 512 lanes);
    # exercises resident weights + the "parallel" batch axis.
    B2 = 2048
    h2 = jax.random.normal(jax.random.PRNGKey(1), (B2, 1), jnp.float32)
    detached2, value2 = critic_forward(h2, prepped, block_b=512)
    jax.block_until_ready(value2)
    ref2 = reference_forward(h2, params)
    assert value2.shape == (B2,)
    assert jnp.allclose(value2, ref2, atol=1e-5, rtol=1e-5)
    assert jnp.allclose(detached2, ref2, atol=1e-5, rtol=1e-5)

    # Case 3: ragged final tile (B not a multiple of the 128-aligned tile).
    B3 = 1500
    h3 = jax.random.normal(jax.random.PRNGKey(2), (B3, 1), jnp.float32)
    detached3, value3 = critic_forward(h3, prepped, block_b=512)
    jax.block_until_ready(value3)
    ref3 = reference_forward(h3, params)
    assert value3.shape == (B3,)
    assert jnp.allclose(value3, ref3, atol=1e-5, rtol=1e-5)
    assert jnp.allclose(detached3, ref3, atol=1e-5, rtol=1e-5)

    print("KERNEL_OK")
</pallas_src>

<mosaic_0001>
module attributes {stable_mosaic.version = 11 : i64} {
  func.func @_critic_kernel(%arg0: i32, %arg1: memref<1x64xf32, #tpu.memory_space<vmem>>, %arg2: memref<16x1xf32, #tpu.memory_space<vmem>>, %arg3: memref<16x1xf32, #tpu.memory_space<vmem>>, %arg4: memref<8x16xf32, #tpu.memory_space<vmem>>, %arg5: memref<8x1xf32, #tpu.memory_space<vmem>>, %arg6: memref<8x1xf32, #tpu.memory_space<vmem>>, %arg7: memref<1x1xf32, #tpu.memory_space<vmem>>, %arg8: memref<1x64xf32, #tpu.memory_space<vmem>>) attributes {dimension_semantics = [#tpu.dimension_semantics<parallel>], iteration_bounds = array<i64: 1>, scalar_prefetch = 0 : i64, scratch_operands = 0 : i64, tpu.core_type = #tpu.core_type<tc>, window_params = [{transform_indices = @transform_0, window_bounds = array<i64: 1, 64>}, {pipeline_mode = #tpu.pipeline_mode<synchronous>, transform_indices = @transform_1, window_bounds = array<i64: 16, 1>}, {pipeline_mode = #tpu.pipeline_mode<synchronous>, transform_indices = @transform_2, window_bounds = array<i64: 16, 1>}, {pipeline_mode = #tpu.pipeline_mode<synchronous>, transform_indices = @transform_3, window_bounds = array<i64: 8, 16>}, {pipeline_mode = #tpu.pipeline_mode<synchronous>, transform_indices = @transform_4, window_bounds = array<i64: 8, 1>}, {pipeline_mode = #tpu.pipeline_mode<synchronous>, transform_indices = @transform_5, window_bounds = array<i64: 8, 1>}, {pipeline_mode = #tpu.pipeline_mode<synchronous>, transform_indices = @transform_6, window_bounds = array<i64: 1, 1>}, {transform_indices = @transform_7, window_bounds = array<i64: 1, 64>}]} {
    %c0 = arith.constant 0 : index
    %c0_0 = arith.constant 0 : index
    %0 = vector.load %arg1[%c0, %c0_0] : memref<1x64xf32, #tpu.memory_space<vmem>>, vector<1x64xf32>
    %c0_1 = arith.constant 0 : index
    %c0_2 = arith.constant 0 : index
    %1 = vector.load %arg2[%c0_1, %c0_2] : memref<16x1xf32, #tpu.memory_space<vmem>>, vector<16x1xf32>
    %2 = vector.broadcast %1 : vector<16x1xf32> to vector<16x64xf32>
    %3 = vector.broadcast %0 : vector<1x64xf32> to vector<16x64xf32>
    %4 = arith.mulf %2, %3 : vector<16x64xf32>
    %c0_3 = arith.constant 0 : index
    %c0_4 = arith.constant 0 : index
    %5 = vector.load %arg3[%c0_3, %c0_4] : memref<16x1xf32, #tpu.memory_space<vmem>>, vector<16x1xf32>
    %6 = vector.broadcast %5 : vector<16x1xf32> to vector<16x64xf32>
    %7 = arith.addf %4, %6 : vector<16x64xf32>
    %cst = arith.constant 0.000000e+00 : f32
    %8 = vector.broadcast %cst : f32 to vector<16x64xf32>
    %9 = arith.maximumf %7, %8 : vector<16x64xf32>
    %c0_5 = arith.constant 0 : index
    %c0_6 = arith.constant 0 : index
    %10 = vector.load %arg4[%c0_5, %c0_6] : memref<8x16xf32, #tpu.memory_space<vmem>>, vector<8x16xf32>
    %cst_7 = arith.constant dense<0.000000e+00> : vector<8x64xf32>
    %11 = tpu.matmul %10, %9, %cst_7 {dimension_numbers = #tpu.dot_dimension_numbers<[1], [0], [0], [1], [0, 0, 1, 1], [], []>} : vector<8x16xf32>, vector<16x64xf32>, vector<8x64xf32> -> vector<8x64xf32>
    %c0_8 = arith.constant 0 : index
    %c0_9 = arith.constant 0 : index
    %12 = vector.load %arg5[%c0_8, %c0_9] : memref<8x1xf32, #tpu.memory_space<vmem>>, vector<8x1xf32>
    %13 = vector.broadcast %12 : vector<8x1xf32> to vector<8x64xf32>
    %14 = arith.addf %11, %13 : vector<8x64xf32>
    %cst_10 = arith.constant 0.000000e+00 : f32
    %15 = vector.broadcast %cst_10 : f32 to vector<8x64xf32>
    %16 = arith.maximumf %14, %15 : vector<8x64xf32>
    %c0_11 = arith.constant 0 : index
    %c0_12 = arith.constant 0 : index
    %17 = vector.load %arg6[%c0_11, %c0_12] : memref<8x1xf32, #tpu.memory_space<vmem>>, vector<8x1xf32>
    %18 = vector.broadcast %17 : vector<8x1xf32> to vector<8x64xf32>
    %19 = arith.mulf %16, %18 : vector<8x64xf32>
    %cst_13 = arith.constant dense<0.000000e+00> : vector<64xf32>
    %20 = vector.multi_reduction <add>, %19, %cst_13 [0] : vector<8x64xf32> to vector<64xf32>
    %21 = vector.shape_cast %20 : vector<64xf32> to vector<1x64xf32>
    %c0_14 = arith.constant 0 : index
    %c0_15 = arith.constant 0 : index
    %22 = vector.load %arg7[%c0_14, %c0_15] : memref<1x1xf32, #tpu.memory_space<vmem>>, vector<1x1xf32>
    %23 = vector.broadcast %22 : vector<1x1xf32> to vector<1x64xf32>
    %24 = arith.addf %21, %23 : vector<1x64xf32>
    %c0_16 = arith.constant 0 : index
    %c0_17 = arith.constant 0 : index
    %25 = vector.load %arg8[%c0_16, %c0_17] : memref<1x64xf32, #tpu.memory_space<vmem>>, vector<1x64xf32>
    tpu.vector_store %arg8[%c0_16, %c0_17], %24 {strides = array<i32>} : memref<1x64xf32, #tpu.memory_space<vmem>>, vector<1x64xf32>,
    return
  }
  func.func @transform_0(%arg0: i32) -> (i32, i32) {
    %c0_i32 = arith.constant 0 : i32
    %c0_i32_0 = arith.constant 0 : i32
    return %c0_i32, %arg0 : i32, i32
  }
  func.func @transform_1(%arg0: i32) -> (i32, i32) {
    %c0_i32 = arith.constant 0 : i32
    %c0_i32_0 = arith.constant 0 : i32
    %c0_i32_1 = arith.constant 0 : i32
    return %c0_i32, %c0_i32_0 : i32, i32
  }
  func.func @transform_2(%arg0: i32) -> (i32, i32) {
    %c0_i32 = arith.constant 0 : i32
    %c0_i32_0 = arith.constant 0 : i32
    %c0_i32_1 = arith.constant 0 : i32
    return %c0_i32, %c0_i32_0 : i32, i32
  }
  func.func @transform_3(%arg0: i32) -> (i32, i32) {
    %c0_i32 = arith.constant 0 : i32
    %c0_i32_0 = arith.constant 0 : i32
    %c0_i32_1 = arith.constant 0 : i32
    return %c0_i32, %c0_i32_0 : i32, i32
  }
  func.func @transform_4(%arg0: i32) -> (i32, i32) {
    %c0_i32 = arith.constant 0 : i32
    %c0_i32_0 = arith.constant 0 : i32
    %c0_i32_1 = arith.constant 0 : i32
    return %c0_i32, %c0_i32_0 : i32, i32
  }
  func.func @transform_5(%arg0: i32) -> (i32, i32) {
    %c0_i32 = arith.constant 0 : i32
    %c0_i32_0 = arith.constant 0 : i32
    %c0_i32_1 = arith.constant 0 : i32
    return %c0_i32, %c0_i32_0 : i32, i32
  }
  func.func @transform_6(%arg0: i32) -> (i32, i32) {
    %c0_i32 = arith.constant 0 : i32
    %c0_i32_0 = arith.constant 0 : i32
    %c0_i32_1 = arith.constant 0 : i32
    return %c0_i32, %c0_i32_0 : i32, i32
  }
  func.func @transform_7(%arg0: i32) -> (i32, i32) {
    %c0_i32 = arith.constant 0 : i32
    %c0_i32_0 = arith.constant 0 : i32
    return %c0_i32, %arg0 : i32, i32
  }
}

</mosaic_0001>

<llo_original>
// kernel: critic_forward.1
$region0: #{critic_forward.1}
  #allocation0 [shape = 'u32[]', space=smem, size = 0x4, offset = 0x4, fixed_abs, tag = 'smem constant byte address 0x4 - core index']
  #allocation1 [shape = 'u32[144,128]{1,0:T(1,128)}', space=vmem, size = 0x12000, scoped, tag = 'internal scratch']
  #allocation2 [shape = 'f32[1,1]{1,0:T(1,128)S(1)}', space=vmem, size = 0x200, scoped, tag = 'scoped memory for critic_forward.1']
  %s0 = inlined_call_operand.vmem [shape: f32[1,64], index: 0, kind: input, shape index: {}]
  %s1 = inlined_call_operand.vmem [shape: f32[16,1], index: 1, kind: input, shape index: {}]
  %s2 = inlined_call_operand.vmem [shape: f32[16,1], index: 2, kind: input, shape index: {}]
  %s3 = inlined_call_operand.vmem [shape: f32[8,16], index: 3, kind: input, shape index: {}]
  %s4 = inlined_call_operand.vmem [shape: f32[8,1], index: 4, kind: input, shape index: {}]
  %s5 = inlined_call_operand.vmem [shape: f32[8,1], index: 5, kind: input, shape index: {}]
  %s6 = inlined_call_operand.<no memory space> [shape: f32[1,1], index: 6, kind: input, shape index: {}]
  %s7 = inlined_call_operand.vmem [shape: f32[1,64], index: 7, kind: output, shape index: {}]
  %s8 = sld [smem:[#allocation0]]
  $region38: #{critic_forward.1} parent=0
    _
  %s10 = ssub.s32 1, %s8
  %s11 = scalar_select 0, %s10, %s8
  %v12 = vstv %s6
  %13 = vst [vmem:[#allocation2] sm:$0x1] %v12
  // Predicated region
  $region2: #{critic_forward.1} parent=0 // pred_check
    _
  $region3: #{critic_forward.1} parent=0 // pred_check_branch
    %15 = sbr.rel (0) target = $region5
  $region4: #{critic_forward.1} parent=0 // pred_region
    _
  $region5: #{critic_forward.1} parent=0 // pred_fallthru
    _
  // Predicated region
  $region6: #{critic_forward.1} parent=0 // pred_check
    _
  $region7: #{critic_forward.1} parent=0 // pred_check_branch
    %17 = sbr.rel (0) target = $region9
  $region8: #{critic_forward.1} parent=0 // pred_region
    _
  $region9: #{critic_forward.1} parent=0 // pred_fallthru
    _
  // Predicated region
  $region10: #{critic_forward.1} parent=0 // pred_check
    _
  $region11: #{critic_forward.1} parent=0 // pred_check_branch
    %19 = sbr.rel (0) target = $region13
  $region12: #{critic_forward.1} parent=0 // pred_region
    _
  $region13: #{critic_forward.1} parent=0 // pred_fallthru
    _
  // Predicated region
  $region14: #{critic_forward.1} parent=0 // pred_check
    _
  $region15: #{critic_forward.1} parent=0 // pred_check_branch
    %21 = sbr.rel (0) target = $region17
  $region16: #{critic_forward.1} parent=0 // pred_region
    _
  $region17: #{critic_forward.1} parent=0 // pred_fallthru
    _
  // Predicated region
  $region18: #{critic_forward.1} parent=0 // pred_check
    _
  $region19: #{critic_forward.1} parent=0 // pred_check_branch
    %23 = sbr.rel (0) target = $region21
  $region20: #{critic_forward.1} parent=0 // pred_region
    _
  $region21: #{critic_forward.1} parent=0 // pred_fallthru
    _
  // Predicated region
  $region22: #{critic_forward.1} parent=0 // pred_check
    _
  $region23: #{critic_forward.1} parent=0 // pred_check_branch
    %25 = sbr.rel (0) target = $region25
  $region24: #{critic_forward.1} parent=0 // pred_region
    _
  $region25: #{critic_forward.1} parent=0 // pred_fallthru
    _
  // Predicated region
  $region26: #{critic_forward.1} parent=0 // pred_check
    _
  $region27: #{critic_forward.1} parent=0 // pred_check_branch
    %27 = sbr.rel (0) target = $region29
  $region28: #{critic_forward.1} parent=0 // pred_region
    _
  $region29: #{critic_forward.1} parent=0 // pred_fallthru
    _
  %v28 = vld [vmem:[%s0] sm:$0x1]
  %v29 = vld [vmem:[%s1] sm:$0xff]
  %v30 = vld [vmem:[%s1 + $0x8] sm:$0xff]
  %32 = vset.pattern.permute.xlu0 0
  %33 = vperm.xlu0 %32, %v29
  %v34 = vpop.permute.xlu0 %33
  %37 = vset.pattern.permute.xlu0 0
  %38 = vperm.xlu0 %37, %v30
  %v39 = vpop.permute.xlu0 %38
  %v42 = vlaneseq
  %v43 = vshrl.u32 %v42, 7
  %v44 = vsub.s32 0, %v43
  %v45 = vrot.slane %v28, %v44
  %v47 = vmul.f32 %v34, %v45
  %v48 = vmul.f32 %v39, %v45
  %v49 = vld [vmem:[%s2] sm:$0xff]
  %v50 = vld [vmem:[%s2 + $0x8] sm:$0xff]
  %52 = vset.pattern.permute.xlu0 0
  %53 = vperm.xlu0 %52, %v49
  %v54 = vpop.permute.xlu0 %53
  %57 = vset.pattern.permute.xlu0 0
  %58 = vperm.xlu0 %57, %v50
  %v59 = vpop.permute.xlu0 %58
  %v61 = vadd.f32 %v47, %v54
  %v62 = vadd.f32 %v48, %v59
  %v63 = vmax.f32 %v61, 0.0
  %v64 = vmax.f32 %v62, 0.0
  %v65 = vld [vmem:[%s3] sm:$0xff]
  %v66 = vld [vmem:[%s4] sm:$0xff]
  %68 = vset.pattern.permute.xlu0 0
  %69 = vperm.xlu0 %68, %v66
  %v70 = vpop.permute.xlu0 %69
  %vm72 = vcmask 130048
  %v74 = vsel %vm72, %v65, 0
  %76 = vmatprep.subr.mxu0 0.0
  %77 = vmatpush1.msra.mxu0 %v63
  %78 = vmatprep.subr.mxu0 0.0
  %79 = vmatpush1.msra.mxu0 %v64
  %80 = vmatprep.subr.mxu0 0.0
  %81 = vmatpush1.msra.mxu0 0.0
  %82 = vmatprep.subr.mxu0 0.0
  %83 = vmatpush1.msra.mxu0 0.0
  %84 = vmatprep.subr.mxu0 0.0
  %85 = vmatpush1.msra.mxu0 0.0
  %86 = vmatprep.subr.mxu0 0.0
  %87 = vmatpush1.msra.mxu0 0.0
  %88 = vmatprep.subr.mxu0 0.0
  %89 = vmatpush1.msra.mxu0 0.0
  %90 = vmatprep.subr.mxu0 0.0
  %91 = vmatpush1.msra.mxu0 0.0
  %92 = vmatprep.subr.mxu0 0.0
  %93 = vmatpush1.msra.mxu0 0.0
  %94 = vmatprep.subr.mxu0 0.0
  %95 = vmatpush1.msra.mxu0 0.0
  %96 = vmatprep.subr.mxu0 0.0
  %97 = vmatpush1.msra.mxu0 0.0
  %98 = vmatprep.subr.mxu0 0.0
  %99 = vmatpush1.msra.mxu0 0.0
  %100 = vmatprep.subr.mxu0 0.0
  %101 = vmatpush1.msra.mxu0 0.0
  %102 = vmatprep.subr.mxu0 0.0
  %103 = vmatpush1.msra.mxu0 0.0
  %104 = vmatprep.subr.mxu0 0.0
  %105 = vmatpush1.msra.mxu0 0.0
  %106 = vmatprep.subr.mxu0 0.0
  %107 = vmatpush1.msra.mxu0 0.0
  %108 = vmatprep.subr.mxu0 0.0
  %109 = vmatpush1.msra.mxu0 0.0
  %110 = vmatprep.subr.mxu0 0.0
  %111 = vmatpush1.msra.mxu0 0.0
  %112 = vmatprep.subr.mxu0 0.0
  %113 = vmatpush1.msra.mxu0 0.0
  %114 = vmatprep.subr.mxu0 0.0
  %115 = vmatpush1.msra.mxu0 0.0
  %116 = vmatprep.subr.mxu0 0.0
  %117 = vmatpush1.msra.mxu0 0.0
  %118 = vmatprep.subr.mxu0 0.0
  %119 = vmatpush1.msra.mxu0 0.0
  %120 = vmatprep.subr.mxu0 0.0
  %121 = vmatpush1.msra.mxu0 0.0
  %122 = vmatprep.subr.mxu0 0.0
  %123 = vmatpush1.msra.mxu0 0.0
  %124 = vmatprep.subr.mxu0 0.0
  %125 = vmatpush1.msra.mxu0 0.0
  %126 = vmatprep.subr.mxu0 0.0
  %127 = vmatpush1.msra.mxu0 0.0
  %128 = vmatprep.subr.mxu0 0.0
  %129 = vmatpush1.msra.mxu0 0.0
  %130 = vmatprep.subr.mxu0 0.0
  %131 = vmatpush1.msra.mxu0 0.0
  %132 = vmatprep.subr.mxu0 0.0
  %133 = vmatpush1.msra.mxu0 0.0
  %134 = vmatprep.subr.mxu0 0.0
  %135 = vmatpush1.msra.mxu0 0.0
  %136 = vmatprep.subr.mxu0 0.0
  %137 = vmatpush1.msra.mxu0 0.0
  %138 = vmatprep.subr.mxu0 0.0
  %139 = vmatpush1.msra.mxu0 0.0
  %140 = vmatprep.mubr.f32.mxu0 0.0
  %141 = vmatmul.mubr.f32.gmra.mrb[0].mxu0 %v74
  %v142 = vpop.f32.mrb[0].mxu0
  %v143 = vadd.f32 %v70, %v142
  %v144 = vpop.f32.mrb[0].mxu0
  %145 = vdwg.mxu0
  %v146 = vmax.f32 %v143, 0.0
  %v147 = vld [vmem:[%s5] sm:$0xff]
  %149 = vset.pattern.permute.xlu0 0
  %150 = vperm.xlu0 %149, %v147
  %v151 = vpop.permute.xlu0 %150
  %v153 = vmul.f32 %v146, %v151
  %vm154 = vcmask 523264
  %v155 = vsel %vm154, %v153, 0.0
  %v156 = vrot.slane %v155, 4
  %v157 = vadd.f32 %v155, %v156
  %v158 = vrot.slane %v157, 2
  %v159 = vadd.f32 %v157, %v158
  %v160 = vrot.slane %v159, 1
  %v161 = vadd.f32 %v159, %v160
  %v162 = vld [vmem:[#allocation2] sm:$0x1]
  %164 = vset.pattern.permute.xlu0 0
  %165 = vperm.xlu0 %164, %v162
  %v166 = vpop.permute.xlu0 %165
  %v168 = vlaneseq
  %v169 = vshrl.u32 %v168, 7
  %v170 = vsub.s32 0, %v169
  %v171 = vrot.slane %v166, %v170
  %v172 = vadd.f32 %v161, %v171
  %vm173 = vcmask 516096
  %174 = vst.msk [vmem:[%s7] sm:$0x1] %vm173, %v172
  // Predicated region
  $region30: #{critic_forward.1} parent=0 // pred_check
    _
  $region31: #{critic_forward.1} parent=0 // pred_check_branch
    %176 = sbr.rel (0) target = $region33
  $region32: #{critic_forward.1} parent=0 // pred_region
    _
  $region33: #{critic_forward.1} parent=0 // pred_fallthru
    _
  // Predicated region
  $region34: #{critic_forward.1} parent=0 // pred_check
    _
  $region35: #{critic_forward.1} parent=0 // pred_check_branch
    %178 = sbr.rel (0) target = $region37
  $region36: #{critic_forward.1} parent=0 // pred_region
    _
  $region37: #{critic_forward.1} parent=0 // pred_fallthru
    _

</llo_original>
